<compile_context>
chip_gen: v6e
topology: v6e:2x2x1
jax: 0.10.0
libtpu: 0.0.40
codegen_flags: <defaults>
</compile_context>

<pallas_src>
import jax
import jax.numpy as jnp
from jax.experimental import pallas as pl
from jax.experimental.pallas import tpu as pltpu

_LANE = 128
_WIDTH_CANDIDATES = (1024, 512, 256, 128)   # lane-dense slab widths
_BLOCK_ELEMS = 2048 * 1024                  # ~2M elems/block: 8 MiB f32, 4 MiB bf16
_SMALL_BYTES = 512 * 1024                   # single-block (grid-free) threshold
_VMEM_LIMIT_BYTES = 48 << 20                # > scoped defaults, < v7x 64 MiB physical


def _gaussian_kernel(x_ref, o_ref):
    # Compute in f32 regardless of input dtype; cast back on store.
    x = x_ref[...].astype(jnp.float32)
    o_ref[...] = jnp.exp(-5.0 * x * x).astype(o_ref.dtype)


def _pick_width(n):
    """Largest lane-dense width that divides n exactly (zero-copy reshape)."""
    for w in _WIDTH_CANDIDATES:
        if n % w == 0:
            return w
    return None


def gaussian(x):
    """exp(-5 * x**2), elementwise. Accepts any shape; returns same shape."""
    orig_shape = x.shape
    if not jnp.issubdtype(x.dtype, jnp.floating):
        # Match torch.exp's promotion of integer inputs to float.
        x = x.astype(jnp.float32)
    dtype = x.dtype
    n = x.size
    if n == 0:
        return jnp.zeros(orig_shape, dtype)

    flat = x.reshape(-1)
    width = _pick_width(n)
    padded_n = n
    if width is None:
        # Correctness fallback for sizes not divisible by 128 (rare for NN
        # activations). Pads at most 127 elements but materializes a copy.
        # TODO(synk): handle the <128-element tail with a separate tiny call
        # instead of a full-array pad for huge ragged sizes.
        width = _LANE
        padded_n = pl.cdiv(n, _LANE) * _LANE
        flat = jnp.pad(flat, (0, padded_n - n))

    rows = padded_n // width
    x2 = flat.reshape(rows, width)          # contiguous reshape: no HBM copy

    itemsize = jnp.dtype(dtype).itemsize
    cost = pl.CostEstimate(
        flops=2 * n,
        transcendentals=n,
        bytes_accessed=2 * n * itemsize,
    )

    if padded_n * itemsize <= _SMALL_BYTES:
        # ---- tiny-input path: one block, no grid (avoid per-step overhead) ----
        out = pl.pallas_call(
            _gaussian_kernel,
            out_shape=jax.ShapeDtypeStruct((rows, width), dtype),
            in_specs=[pl.BlockSpec((rows, width), lambda: (0, 0))],
            out_specs=pl.BlockSpec((rows, width), lambda: (0, 0)),
            cost_estimate=cost,
        )(x2)
    else:
        # ---- streaming path: big blocks, ragged last block, parallel grid ----
        target_rows = max(8, _BLOCK_ELEMS // width)
        # Cap at ~half the rows (rounded up to a sublane multiple) so there are
        # always >= 2 grid steps -> both v7x TensorCores drive HBM.
        half_rows = -(-rows // 2)
        half_rows = -(-half_rows // 8) * 8
        block_rows = max(8, min(target_rows, half_rows))
        grid = (pl.cdiv(rows, block_rows),)

        out = pl.pallas_call(
            _gaussian_kernel,
            out_shape=jax.ShapeDtypeStruct((rows, width), dtype),
            grid=grid,
            in_specs=[pl.BlockSpec((block_rows, width), lambda i: (i, 0))],
            out_specs=pl.BlockSpec((block_rows, width), lambda i: (i, 0)),
            compiler_params=pltpu.CompilerParams(
                dimension_semantics=("parallel",),
                vmem_limit_bytes=_VMEM_LIMIT_BYTES,
            ),
            cost_estimate=cost,
        )(x2)

    if padded_n != n:
        return out.reshape(-1)[:n].reshape(orig_shape)
    return out.reshape(orig_shape)


if __name__ == "__main__":
    key = jax.random.PRNGKey(0)
    k1, k2, k3, k4 = jax.random.split(key, 4)

    # 1) Small NCHW activation (tiny single-block path).
    x_small = jax.random.normal(k1, (2, 4, 16, 16), dtype=jnp.float32)
    y_small = jax.block_until_ready(gaussian(x_small))
    ref_small = jnp.exp(-5.0 * x_small ** 2)
    assert y_small.shape == x_small.shape and y_small.dtype == x_small.dtype
    assert jnp.allclose(y_small, ref_small, atol=1e-6, rtol=1e-6)

    # 2) Larger tensor (grid path, zero-pad, ragged last block across the grid).
    x_big = jax.random.normal(k2, (4, 1000, 384), dtype=jnp.float32)
    y_big = jax.block_until_ready(gaussian(x_big))
    ref_big = jnp.exp(-5.0 * x_big ** 2)
    assert y_big.shape == x_big.shape and y_big.dtype == x_big.dtype
    assert jnp.allclose(y_big, ref_big, atol=1e-6, rtol=1e-6)

    # 3) Size not divisible by 128 (pad fallback path).
    x_odd = jax.random.normal(k3, (7, 13, 5), dtype=jnp.float32)
    y_odd = jax.block_until_ready(gaussian(x_odd))
    ref_odd = jnp.exp(-5.0 * x_odd ** 2)
    assert y_odd.shape == x_odd.shape and y_odd.dtype == x_odd.dtype
    assert jnp.allclose(y_odd, ref_odd, atol=1e-6, rtol=1e-6)

    # 4) bf16 input (f32 compute in-kernel, cast back on store).
    x_bf = jax.random.normal(k4, (2, 4, 16, 16), dtype=jnp.bfloat16)
    y_bf = jax.block_until_ready(gaussian(x_bf))
    ref_bf = jnp.exp(-5.0 * x_bf.astype(jnp.float32) ** 2).astype(jnp.bfloat16)
    assert y_bf.shape == x_bf.shape and y_bf.dtype == x_bf.dtype
    assert jnp.allclose(y_bf.astype(jnp.float32), ref_bf.astype(jnp.float32),
                        atol=1e-2, rtol=1e-2)

    print("KERNEL_OK")
</pallas_src>

<mosaic_0001>
module attributes {stable_mosaic.version = 11 : i64} {
  func.func @_gaussian_kernel(%arg0: memref<2x1024xf32, #tpu.memory_space<vmem>>, %arg1: memref<2x1024xf32, #tpu.memory_space<vmem>>) attributes {dimension_semantics = [], scalar_prefetch = 0 : i64, scratch_operands = 0 : i64, tpu.core_type = #tpu.core_type<tc>} {
    %c0 = arith.constant 0 : index
    %c0_0 = arith.constant 0 : index
    %0 = vector.load %arg0[%c0, %c0_0] : memref<2x1024xf32, #tpu.memory_space<vmem>>, vector<2x1024xf32>
    %cst = arith.constant -5.000000e+00 : f32
    %1 = vector.broadcast %cst : f32 to vector<2x1024xf32>
    %2 = arith.mulf %1, %0 : vector<2x1024xf32>
    %3 = arith.mulf %2, %0 : vector<2x1024xf32>
    %4 = math.exp %3 : vector<2x1024xf32>
    %c0_1 = arith.constant 0 : index
    %c0_2 = arith.constant 0 : index
    %5 = vector.load %arg1[%c0_1, %c0_2] : memref<2x1024xf32, #tpu.memory_space<vmem>>, vector<2x1024xf32>
    tpu.vector_store %arg1[%c0_1, %c0_2], %4 {strides = array<i32>} : memref<2x1024xf32, #tpu.memory_space<vmem>>, vector<2x1024xf32>,
    return
  }
}

</mosaic_0001>

<llo_original>
// kernel: tpu_custom_call.1
$region0: #{tpu_custom_call.1}
  #allocation0 [shape = 'u32[]', space=smem, size = 0x4, offset = 0x4, fixed_abs, tag = 'smem constant byte address 0x4 - core index']
  #allocation1 [shape = 'u32[144,128]{1,0:T(1,128)}', space=vmem, size = 0x12000, scoped, tag = 'internal scratch']
  %s0 = inlined_call_operand.hbm [shape: f32[2,1024], index: 0, kind: input, shape index: {}]
  %s1 = inlined_call_operand.hbm [shape: f32[2,1024], index: 1, kind: output, shape index: {}]
  %s2 = sld [smem:[#allocation0]]
  $region18: #{tpu_custom_call.1} parent=0
    _
  %s4 = ssub.s32 1, %s2
  %s5 = scalar_select 0, %s4, %s2
  $region1: #{tpu_custom_call.1} parent=0
    #allocation2 [shape = 'u8[8192]{0}', space=vmem, size = 0x2000, scoped, tag = 'input window, operand 0, single buffered']
    #allocation3 [shape = 's32[1]{0}', space=sflag, size = 0x4, scoped, tag = 'scoped memory for tpu_custom_call.1']
    #allocation4 [shape = 's32[1]{0}', space=sflag, size = 0x4, scoped, tag = 'scoped memory for tpu_custom_call.1']
    #allocation5 [shape = 'u8[8192]{0}', space=vmem, size = 0x2000, scoped, tag = 'output window, operand 0, single buffered']
    %6 = vsyncpa [#allocation3], 0
    %7 = vsyncpa [#allocation4], 0
    // Predicated region
    $region2: #{tpu_custom_call.1} parent=1 // pred_check
      _
    $region3: #{tpu_custom_call.1} parent=1 // pred_check_branch
      %9 = sbr.rel (0) target = $region5
    $region4: #{tpu_custom_call.1} parent=1 // pred_region
      %s11 = ssub.s32 256, 256
      %12 = vsyncadd [#allocation3], %s11
      %s14 = sshll.u32 [#allocation2], 4
      %s15 = int_to_ptr.vmem [resolvable:$true] %s14
      %17 = dma.hbm_to_vmem [thread:$0]  %s0, 256, %s15, [#allocation3]
    $region5: #{tpu_custom_call.1} parent=1 // pred_fallthru
      _
    // Predicated region
    $region6: #{tpu_custom_call.1} parent=1 // pred_check
      _
    $region7: #{tpu_custom_call.1} parent=1 // pred_check_branch
      %19 = sbr.rel (0) target = $region9
    $region8: #{tpu_custom_call.1} parent=1 // pred_region
      %20 = dma.done [#allocation3], 256
    $region9: #{tpu_custom_call.1} parent=1 // pred_fallthru
      _
    %v21 = vld [vmem:[#allocation2] sm:$0xff]
    %v22 = vld [vmem:[#allocation2 + $0x8] sm:$0xff]
    %v23 = vmul.f32 %v21, -5.0
    %v24 = vmul.f32 %v22, -5.0
    %v25 = vmul.f32 %v23, %v21
    %v26 = vmul.f32 %v24, %v22
    %v27 = vmul.f32 %v25, 1.442695
    %v28 = vpow.pop %v27
    %v29 = vmul.f32 %v26, 1.442695
    %v30 = vpow.pop %v29
    %31 = vst [vmem:[#allocation5] sm:$0xff] %v28
    %32 = vst [vmem:[#allocation5 + $0x8] sm:$0xff] %v30
    // Predicated region
    $region10: #{tpu_custom_call.1} parent=1 // pred_check
      _
    $region11: #{tpu_custom_call.1} parent=1 // pred_check_branch
      %34 = sbr.rel (0) target = $region13
    $region12: #{tpu_custom_call.1} parent=1 // pred_region
      %s36 = ssub.s32 256, 256
      %37 = vsyncadd [#allocation4], %s36
      %s39 = sshll.u32 [#allocation5], 4
      %s40 = int_to_ptr.vmem [resolvable:$true] %s39
      %42 = dma.vmem_to_hbm [thread:$0]  %s40, 256, %s1, [#allocation4]
    $region13: #{tpu_custom_call.1} parent=1 // pred_fallthru
      _
    // Predicated region
    $region14: #{tpu_custom_call.1} parent=1 // pred_check
      _
    $region15: #{tpu_custom_call.1} parent=1 // pred_check_branch
      %44 = sbr.rel (0) target = $region17
    $region16: #{tpu_custom_call.1} parent=1 // pred_region
      %45 = dma.done [#allocation4], 256
    $region17: #{tpu_custom_call.1} parent=1 // pred_fallthru
      _
    %46 = vsyncpa [#allocation3], 1
    %47 = vsyncpa [#allocation4], 1

</llo_original>
